<compile_context>
chip_gen: v5e
topology: v5e:2x2
jax: 0.10.0
libtpu: 0.0.40
codegen_flags: <defaults>
</compile_context>

<pallas_src>
import math

import jax
import jax.numpy as jnp
from jax.experimental import pallas as pl
from jax.experimental.pallas import tpu as pltpu

_LANES = 128


def _graph_conv_kernel(x_ref, w_ref, adjbd_ref, bias_ref, out_ref):
    # x_ref:     (BB*N, Fin)     BB batch elements, rows stacked
    # w_ref:     (Fin, Fout_p)   weight, Fout padded to a 128-lane multiple
    # adjbd_ref: (BB*N, BB*N)    block-diagonal att*mask (batch-invariant)
    # bias_ref:  (1, Fout_p)
    # out_ref:   (BB*N, Fout_p)
    x = x_ref[...]

    # support = x @ W : one MXU matmul with M = BB*N rows.
    support = jnp.dot(x, w_ref[...], preferred_element_type=jnp.float32)

    # Normalize rows once; cosine similarity becomes a plain Gram matmul.
    # Exact 1/sqrt keeps rounding-level agreement with the torch formula
    # (pl.reciprocal(..., approx=True) is an option if accuracy budget allows).
    sq = jnp.sum(x * x, axis=-1, keepdims=True)            # (R, 1)
    x_hat = x * (1.0 / jnp.sqrt(sq))

    # Gram matrix without materializing x^T: contract last dims of both sides.
    gram = jax.lax.dot_general(
        x_hat, x_hat,
        dimension_numbers=(((1,), (1,)), ((), ())),
        preferred_element_type=jnp.float32)                # (R, R)

    # Block-diagonal (att*mask) zeroes cross-batch terms, so a single 2-D
    # matmul reproduces the per-batch adj @ support exactly.
    adj = adjbd_ref[...] * gram
    out = jnp.dot(adj, support, preferred_element_type=jnp.float32)
    out_ref[...] = (out + bias_ref[...]).astype(out_ref.dtype)


def _pick_batch_block(B, N, target_rows=256):
    """Largest divisor BB of B whose row block BB*N stays near one MXU tile and
    satisfies the (8,128) sublane rule (BB*N % 8 == 0, or block == full array).
    NOTE(v7x): for large B prefer leaving an even grid (B // BB >= 2) so the
    parallel batch axis shards across both TensorCores."""
    legal = [bb for bb in range(1, B + 1)
             if B % bb == 0 and ((bb * N) % 8 == 0 or bb == B)]
    within = [bb for bb in legal if bb * N <= target_rows]
    return max(within) if within else min(legal)


def graph_convolution(x, weight, att, bias, mask=None):
    """x: (B, N, Fin); weight: (Fin, Fout); att: (N, N); bias: (Fout,) or None;
    mask: (N, N) or None (None reproduces the `mask == []` branch)."""
    B, N, Fin = x.shape
    Fout = weight.shape[1]

    x = x.astype(jnp.float32)
    weight = weight.astype(jnp.float32)
    att = att.astype(jnp.float32)

    # att * mask is batch-invariant: compute once in the wrapper.
    att_masked = att if mask is None else att * mask.astype(jnp.float32)

    # Pad the output feature dim to a lane multiple so stores are unmasked.
    Fout_p = max(_LANES, ((Fout + _LANES - 1) // _LANES) * _LANES)
    pad_f = Fout_p - Fout
    weight_p = jnp.pad(weight, ((0, 0), (0, pad_f))) if pad_f else weight
    if bias is None:
        bias_p = jnp.zeros((1, Fout_p), jnp.float32)
    else:
        bias_p = jnp.pad(bias.astype(jnp.float32).reshape(1, Fout), ((0, 0), (0, pad_f)))

    # Fold BB batches per grid step; flatten batch into the row dimension.
    BB = _pick_batch_block(B, N)
    G = B // BB
    R = BB * N
    x_flat = x.reshape(B * N, Fin)

    # Block-diagonal adjacency base: I_BB (x) (att*mask)  -> (R, R).
    adj_bd = jnp.kron(jnp.eye(BB, dtype=jnp.float32), att_masked)

    out_flat = pl.pallas_call(
        _graph_conv_kernel,
        out_shape=jax.ShapeDtypeStruct((B * N, Fout_p), jnp.float32),
        grid_spec=pl.GridSpec(
            grid=(G,),
            in_specs=[
                pl.BlockSpec((R, Fin), lambda g: (g, 0)),
                pl.BlockSpec((Fin, Fout_p), lambda g: (0, 0)),
                pl.BlockSpec((R, R), lambda g: (0, 0)),
                pl.BlockSpec((1, Fout_p), lambda g: (0, 0)),
            ],
            out_specs=pl.BlockSpec((R, Fout_p), lambda g: (g, 0)),
        ),
        compiler_params=pltpu.CompilerParams(
            dimension_semantics=("parallel",),
        ),
    )(x_flat, weight_p, adj_bd, bias_p)

    out = out_flat.reshape(B, N, Fout_p)
    if pad_f:
        out = out[..., :Fout]
    return out


def _reference(x, weight, att, bias, mask):
    # Mirrors the PyTorch forward exactly (mup / mdown formulation).
    support = jnp.einsum("bnf,fo->bno", x, weight)
    mup = jnp.einsum("bnf,bmf->bnm", x, x)
    nrm = jnp.linalg.norm(x, axis=-1, keepdims=True)
    mdown = jnp.einsum("bni,bmi->bnm", nrm, nrm)
    w = mup / mdown
    adj = (att * mask)[None] * w
    out = jnp.einsum("bnm,bmo->bno", adj, support)
    return out + bias


if __name__ == "__main__":
    # Small shapes consistent with the module: node_n=10 (default).
    B, N, Fin, Fout = 2, 10, 32, 32

    key = jax.random.PRNGKey(0)
    kx, kw, ka, kb, km = jax.random.split(key, 5)

    # Parameter init mirroring reset_parameters(): uniform(-stdv, stdv).
    stdv = 1.0 / math.sqrt(Fout)
    weight = jax.random.uniform(kw, (Fin, Fout), jnp.float32, -stdv, stdv)
    att = jax.random.uniform(ka, (N, N), jnp.float32, -stdv, stdv)
    bias = jax.random.uniform(kb, (Fout,), jnp.float32, -stdv, stdv)

    x = jax.random.normal(kx, (B, N, Fin), jnp.float32)
    mask = (jax.random.uniform(km, (N, N)) > 0.3).astype(jnp.float32)

    out = graph_convolution(x, weight, att, bias, mask)
    out = jax.block_until_ready(out)

    ref = _reference(x, weight, att, bias, mask)
    assert out.shape == (B, N, Fout)
    assert jnp.allclose(out, ref, atol=2e-4, rtol=2e-4), "mismatch vs reference"

    print("KERNEL_OK")
</pallas_src>

<mosaic_0001>
module attributes {stable_mosaic.version = 11 : i64} {
  func.func @_graph_conv_kernel(%arg0: i32, %arg1: memref<20x32xf32, #tpu.memory_space<vmem>>, %arg2: memref<32x128xf32, #tpu.memory_space<vmem>>, %arg3: memref<20x20xf32, #tpu.memory_space<vmem>>, %arg4: memref<1x128xf32, #tpu.memory_space<vmem>>, %arg5: memref<20x128xf32, #tpu.memory_space<vmem>>) attributes {dimension_semantics = [#tpu.dimension_semantics<parallel>], iteration_bounds = array<i64: 1>, scalar_prefetch = 0 : i64, scratch_operands = 0 : i64, tpu.core_type = #tpu.core_type<tc>, window_params = [{transform_indices = @transform_0, window_bounds = array<i64: 20, 32>}, {pipeline_mode = #tpu.pipeline_mode<synchronous>, transform_indices = @transform_1, window_bounds = array<i64: 32, 128>}, {pipeline_mode = #tpu.pipeline_mode<synchronous>, transform_indices = @transform_2, window_bounds = array<i64: 20, 20>}, {pipeline_mode = #tpu.pipeline_mode<synchronous>, transform_indices = @transform_3, window_bounds = array<i64: 1, 128>}, {transform_indices = @transform_4, window_bounds = array<i64: 20, 128>}]} {
    %c0 = arith.constant 0 : index
    %c0_0 = arith.constant 0 : index
    %0 = vector.load %arg1[%c0, %c0_0] : memref<20x32xf32, #tpu.memory_space<vmem>>, vector<20x32xf32>
    %c0_1 = arith.constant 0 : index
    %c0_2 = arith.constant 0 : index
    %1 = vector.load %arg2[%c0_1, %c0_2] : memref<32x128xf32, #tpu.memory_space<vmem>>, vector<32x128xf32>
    %cst = arith.constant dense<0.000000e+00> : vector<20x128xf32>
    %2 = tpu.matmul %0, %1, %cst {dimension_numbers = #tpu.dot_dimension_numbers<[1], [0], [0], [1], [0, 0, 1, 1], [], []>} : vector<20x32xf32>, vector<32x128xf32>, vector<20x128xf32> -> vector<20x128xf32>
    %3 = arith.mulf %0, %0 : vector<20x32xf32>
    %cst_3 = arith.constant dense<0.000000e+00> : vector<20xf32>
    %4 = vector.multi_reduction <add>, %3, %cst_3 [1] : vector<20x32xf32> to vector<20xf32>
    %5 = vector.shape_cast %4 : vector<20xf32> to vector<20x1xf32>
    %6 = math.sqrt %5 : vector<20x1xf32>
    %cst_4 = arith.constant 1.000000e+00 : f32
    %7 = vector.broadcast %cst_4 : f32 to vector<20x1xf32>
    %8 = arith.divf %7, %6 : vector<20x1xf32>
    %9 = vector.broadcast %8 : vector<20x1xf32> to vector<20x32xf32>
    %10 = arith.mulf %0, %9 : vector<20x32xf32>
    %cst_5 = arith.constant dense<0.000000e+00> : vector<20x20xf32>
    %11 = tpu.matmul %10, %10, %cst_5 {dimension_numbers = #tpu.dot_dimension_numbers<[1], [1], [0], [0], [0, 0, 1, 0], [], []>} : vector<20x32xf32>, vector<20x32xf32>, vector<20x20xf32> -> vector<20x20xf32>
    %c0_6 = arith.constant 0 : index
    %c0_7 = arith.constant 0 : index
    %12 = vector.load %arg3[%c0_6, %c0_7] : memref<20x20xf32, #tpu.memory_space<vmem>>, vector<20x20xf32>
    %13 = arith.mulf %12, %11 : vector<20x20xf32>
    %cst_8 = arith.constant dense<0.000000e+00> : vector<20x128xf32>
    %14 = tpu.matmul %13, %2, %cst_8 {dimension_numbers = #tpu.dot_dimension_numbers<[1], [0], [0], [1], [0, 0, 1, 1], [], []>} : vector<20x20xf32>, vector<20x128xf32>, vector<20x128xf32> -> vector<20x128xf32>
    %c0_9 = arith.constant 0 : index
    %c0_10 = arith.constant 0 : index
    %15 = vector.load %arg4[%c0_9, %c0_10] : memref<1x128xf32, #tpu.memory_space<vmem>>, vector<1x128xf32>
    %16 = vector.broadcast %15 : vector<1x128xf32> to vector<20x128xf32>
    %17 = arith.addf %14, %16 : vector<20x128xf32>
    %c0_11 = arith.constant 0 : index
    %c0_12 = arith.constant 0 : index
    %18 = vector.load %arg5[%c0_11, %c0_12] : memref<20x128xf32, #tpu.memory_space<vmem>>, vector<20x128xf32>
    tpu.vector_store %arg5[%c0_11, %c0_12], %17 {strides = array<i32>} : memref<20x128xf32, #tpu.memory_space<vmem>>, vector<20x128xf32>,
    return
  }
  func.func @transform_0(%arg0: i32) -> (i32, i32) {
    %c0_i32 = arith.constant 0 : i32
    %c0_i32_0 = arith.constant 0 : i32
    return %arg0, %c0_i32 : i32, i32
  }
  func.func @transform_1(%arg0: i32) -> (i32, i32) {
    %c0_i32 = arith.constant 0 : i32
    %c0_i32_0 = arith.constant 0 : i32
    %c0_i32_1 = arith.constant 0 : i32
    return %c0_i32, %c0_i32_0 : i32, i32
  }
  func.func @transform_2(%arg0: i32) -> (i32, i32) {
    %c0_i32 = arith.constant 0 : i32
    %c0_i32_0 = arith.constant 0 : i32
    %c0_i32_1 = arith.constant 0 : i32
    return %c0_i32, %c0_i32_0 : i32, i32
  }
  func.func @transform_3(%arg0: i32) -> (i32, i32) {
    %c0_i32 = arith.constant 0 : i32
    %c0_i32_0 = arith.constant 0 : i32
    %c0_i32_1 = arith.constant 0 : i32
    return %c0_i32, %c0_i32_0 : i32, i32
  }
  func.func @transform_4(%arg0: i32) -> (i32, i32) {
    %c0_i32 = arith.constant 0 : i32
    %c0_i32_0 = arith.constant 0 : i32
    return %arg0, %c0_i32 : i32, i32
  }
}

</mosaic_0001>

<llo_original>
// kernel: tpu_custom_call.1
$region0: #{tpu_custom_call.1}
  #allocation0 [shape = 'u32[]', space=smem, size = 0x4, offset = 0x4, fixed_abs, tag = 'smem constant byte address 0x4 - core index']
  #allocation1 [shape = 'u32[72,128]{1,0:T(1,128)}', space=vmem, size = 0x9000, scoped, tag = 'internal scratch']
  %s0 = inlined_call_operand.hbm [shape: f32[20,32], index: 0, kind: input, shape index: {}]
  %s1 = inlined_call_operand.hbm [shape: f32[32,128], index: 1, kind: input, shape index: {}]
  %s2 = inlined_call_operand.hbm [shape: f32[20,20], index: 2, kind: input, shape index: {}]
  %s3 = inlined_call_operand.vmem [shape: f32[1,128], index: 3, kind: input, shape index: {}]
  %s4 = inlined_call_operand.hbm [shape: f32[20,128], index: 4, kind: output, shape index: {}]
  %s5 = sld [smem:[#allocation0]]
  $region38: #{tpu_custom_call.1} parent=0
    _
  %s7 = ssub.s32 1, %s5
  %s8 = scalar_select 0, %s7, %s5
  $region1: #{tpu_custom_call.1} parent=0
    #allocation2 [shape = 'u8[12288]{0}', space=vmem, size = 0x3000, scoped, tag = 'input window, operand 0, single buffered']
    #allocation3 [shape = 's32[1]{0}', space=sflag, size = 0x4, scoped, tag = 'scoped memory for tpu_custom_call.1']
    #allocation4 [shape = 's32[1]{0}', space=sflag, size = 0x4, scoped, tag = 'scoped memory for tpu_custom_call.1']
    #allocation5 [shape = 'u8[16384]{0}', space=vmem, size = 0x4000, scoped, tag = 'input window, operand 1, single buffered']
    #allocation6 [shape = 's32[1]{0}', space=sflag, size = 0x4, scoped, tag = 'scoped memory for tpu_custom_call.1']
    #allocation7 [shape = 'u8[12288]{0}', space=vmem, size = 0x3000, scoped, tag = 'input window, operand 2, single buffered']
    #allocation8 [shape = 'u8[12288]{0}', space=vmem, size = 0x3000, scoped, tag = 'output window, operand 0, single buffered']
    %9 = vsyncpa [#allocation3], 0
    %10 = vsyncpa [#allocation6], 0
    %11 = vsyncpa [#allocation4], 0
    // Predicated region
    $region2: #{tpu_custom_call.1} parent=1 // pred_check
      _
    $region3: #{tpu_custom_call.1} parent=1 // pred_check_branch
      %13 = sbr.rel (0) target = $region5
    $region4: #{tpu_custom_call.1} parent=1 // pred_region
      %15 = vsyncadd [#allocation3], 0
      %s16 = sshll.u32 %s0, 4
      %s17 = int_to_ptr.hbm [resolvable:$true] %s16
      %s18 = sshll.u32 [#allocation2], 4
      %s19 = int_to_ptr.vmem [resolvable:$true] %s18
      %24 = dma.hbm_to_vmem [thread:$0]  %s17, 384, %s19, [#allocation3], 128, 128, 8
    $region5: #{tpu_custom_call.1} parent=1 // pred_fallthru
      _
    // Predicated region
    $region6: #{tpu_custom_call.1} parent=1 // pred_check
      _
    $region7: #{tpu_custom_call.1} parent=1 // pred_check_branch
      %26 = sbr.rel (0) target = $region9
    $region8: #{tpu_custom_call.1} parent=1 // pred_region
      %28 = vsyncadd [#allocation6], 0
      %s29 = sshll.u32 %s1, 4
      %s30 = int_to_ptr.hbm [resolvable:$true] %s29
      %s31 = sshll.u32 [#allocation5], 4
      %s32 = int_to_ptr.vmem [resolvable:$true] %s31
      %37 = dma.hbm_to_vmem [thread:$0]  %s30, 512, %s32, [#allocation6], 128, 128, 8
    $region9: #{tpu_custom_call.1} parent=1 // pred_fallthru
      _
    // Predicated region
    $region10: #{tpu_custom_call.1} parent=1 // pred_check
      _
    $region11: #{tpu_custom_call.1} parent=1 // pred_check_branch
      %39 = sbr.rel (0) target = $region13
    $region12: #{tpu_custom_call.1} parent=1 // pred_region
      %41 = vsyncadd [#allocation6], 0
      %s42 = sshll.u32 %s2, 4
      %s43 = int_to_ptr.hbm [resolvable:$true] %s42
      %s44 = sshll.u32 [#allocation7], 4
      %s45 = int_to_ptr.vmem [resolvable:$true] %s44
      %50 = dma.hbm_to_vmem [thread:$0]  %s43, 384, %s45, [#allocation6], 128, 128, 8
    $region13: #{tpu_custom_call.1} parent=1 // pred_fallthru
      _
    // Predicated region
    $region14: #{tpu_custom_call.1} parent=1 // pred_check
      _
    $region15: #{tpu_custom_call.1} parent=1 // pred_check_branch
      %52 = sbr.rel (0) target = $region17
    $region16: #{tpu_custom_call.1} parent=1 // pred_region
      _
    $region17: #{tpu_custom_call.1} parent=1 // pred_fallthru
      _
    // Predicated region
    $region18: #{tpu_custom_call.1} parent=1 // pred_check
      _
    $region19: #{tpu_custom_call.1} parent=1 // pred_check_branch
      %54 = sbr.rel (0) target = $region21
    $region20: #{tpu_custom_call.1} parent=1 // pred_region
      %56 = dma.done [#allocation3], 384
    $region21: #{tpu_custom_call.1} parent=1 // pred_fallthru
      _
    // Predicated region
    $region22: #{tpu_custom_call.1} parent=1 // pred_check
      _
    $region23: #{tpu_custom_call.1} parent=1 // pred_check_branch
      %58 = sbr.rel (0) target = $region25
    $region24: #{tpu_custom_call.1} parent=1 // pred_region
      %60 = dma.done [#allocation6], 512
    $region25: #{tpu_custom_call.1} parent=1 // pred_fallthru
      _
    // Predicated region
    $region26: #{tpu_custom_call.1} parent=1 // pred_check
      _
    $region27: #{tpu_custom_call.1} parent=1 // pred_check_branch
      %62 = sbr.rel (0) target = $region29
    $region28: #{tpu_custom_call.1} parent=1 // pred_region
      %64 = dma.done [#allocation6], 384
    $region29: #{tpu_custom_call.1} parent=1 // pred_fallthru
      _
    %v65 = vld [vmem:[#allocation2] sm:$0xff]
    %v66 = vld [vmem:[#allocation2 + $0x8] sm:$0xff]
    %v67 = vld [vmem:[#allocation2 + $0x10] sm:$0xf]
    %v68 = vld [vmem:[#allocation5] sm:$0xff]
    %v69 = vld [vmem:[#allocation5 + $0x8] sm:$0xff]
    %v70 = vld [vmem:[#allocation5 + $0x10] sm:$0xff]
    %v71 = vld [vmem:[#allocation5 + $0x18] sm:$0xff]
    %vm72 = vcmask 261120
    %v74 = vsel %vm72, %v65, 0
    %v77 = vsel %vm72, %v66, 0
    %v80 = vsel %vm72, %v67, 0
    %82 = vmatpush.msra.mxu0 0.0
    %83 = vmatpush.msra.mxu0 0.0
    %84 = vmatpush.msra.mxu0 0.0
    %85 = vmatpush.msra.mxu0 0.0
    %86 = vmatpush.msra.mxu0 0.0
    %87 = vmatpush.msra.mxu0 0.0
    %88 = vmatpush.msra.mxu0 0.0
    %89 = vmatpush.msra.mxu0 0.0
    %90 = vmatpush.msra.mxu0 0.0
    %91 = vmatpush.msra.mxu0 0.0
    %92 = vmatpush.msra.mxu0 0.0
    %93 = vmatpush.msra.mxu0 0.0
    %94 = vmatpush.msra.mxu0 %v71
    %95 = vmatpush.msra.mxu0 %v70
    %96 = vmatpush.msra.mxu0 %v69
    %97 = vmatpush.msra.mxu0 %v68
    %98 = vmatmul.f32.gmra.mxu0 %v74
    %v99 = vpop.f32.mrf.mxu0
    %v100 = vadd.f32 0.0, %v99
    %101 = vmatmul.f32.gmra.mxu0 %v77
    %v102 = vpop.f32.mrf.mxu0
    %v103 = vadd.f32 0.0, %v102
    %104 = vmatmul.f32.gmra.mxu0 %v80
    %v105 = vpop.f32.mrf.mxu0
    %v106 = vadd.f32 0.0, %v105
    %107 = vdwg.mxu0
    %v108 = vmul.f32 %v65, %v65
    %v109 = vmul.f32 %v66, %v66
    %v110 = vmul.f32 %v67, %v67
    %v111 = vsel %vm72, %v108, 0.0
    %112 = vadd.xlane.f32.xlu0 %v111
    %v113 = vpop.xlane.xlu0 %112
    %v114 = vsel %vm72, %v109, 0.0
    %115 = vadd.xlane.f32.xlu0 %v114
    %v116 = vpop.xlane.xlu0 %115
    %vm117 = vcmask 257024
    %v118 = vsel %vm117, %v110, 0.0
    %119 = vadd.xlane.f32.xlu0 %v118
    %v120 = vpop.xlane.xlu0 %119
    %v121 = vrsqrt.pop %v113
    %v122 = vmul.f32 %v121, %v113
    %v123 = vmul.f32 %v122, %v121
    %v124 = vmul.f32 0.5, %v123
    %v125 = vsub.f32 1.5, %v124
    %v126 = vmul.f32 %v121, %v125
    %v127 = vmul.f32 %v113, %v126
    %vm128 = vcmp.eq.f32.partialorder %v113, inf
    %v129 = vsel %vm128, %v113, %v127
    %vm130 = vcmp.eq.f32.partialorder %v113, 0.0
    %v131 = vand.u32 %v113, 2147483648
    %v132 = vsel %vm130, %v131, %v129
    %v133 = vrsqrt.pop %v116
    %v134 = vmul.f32 %v133, %v116
    %v135 = vmul.f32 %v134, %v133
    %v136 = vmul.f32 0.5, %v135
    %v137 = vsub.f32 1.5, %v136
    %v138 = vmul.f32 %v133, %v137
    %v139 = vmul.f32 %v116, %v138
    %vm140 = vcmp.eq.f32.partialorder %v116, inf
    %v141 = vsel %vm140, %v116, %v139
    %vm142 = vcmp.eq.f32.partialorder %v116, 0.0
    %v143 = vand.u32 %v116, 2147483648
    %v144 = vsel %vm142, %v143, %v141
    %v145 = vrsqrt.pop %v120
    %v146 = vmul.f32 %v145, %v120
    %v147 = vmul.f32 %v146, %v145
    %v148 = vmul.f32 0.5, %v147
    %v149 = vsub.f32 1.5, %v148
    %v150 = vmul.f32 %v145, %v149
    %v151 = vmul.f32 %v120, %v150
    %vm152 = vcmp.eq.f32.partialorder %v120, inf
    %v153 = vsel %vm152, %v120, %v151
    %vm154 = vcmp.eq.f32.partialorder %v120, 0.0
    %v155 = vand.u32 %v120, 2147483648
    %v156 = vsel %vm154, %v155, %v153
    %v157 = vrcp.pop %v132
    %v158 = vmul.f32 %v132, %v157
    %v159 = vsub.f32 1.0, %v158
    %v160 = vmul.f32 %v157, %v159
    %v161 = vadd.f32 %v157, %v160
    %vm162 = vweird.f32 %v132
    %vm163 = vweird.f32 %v157
    %vm164 = vmor %vm162, %vm163
    %v165 = vsel %vm164, %v157, %v161
    %v166 = vand.u32 2147483647, %v132
    %vm167 = vcmp.eq.f32.partialorder %v166, 8.507059e+37
    %v168 = vand.u32 %v132, 2147483648
    %v169 = vor.u32 1.1754944e-38, %v168
    %v170 = vsel %vm167, %v169, %v165
    %v171 = vmul.f32 1.0, %v170
    %v172 = vrcp.pop %v144
    %v173 = vmul.f32 %v144, %v172
    %v174 = vsub.f32 1.0, %v173
    %v175 = vmul.f32 %v172, %v174
    %v176 = vadd.f32 %v172, %v175
    %vm177 = vweird.f32 %v144
    %vm178 = vweird.f32 %v172
    %vm179 = vmor %vm177, %vm178
    %v180 = vsel %vm179, %v172, %v176
    %v181 = vand.u32 2147483647, %v144
    %vm182 = vcmp.eq.f32.partialorder %v181, 8.507059e+37
    %v183 = vand.u32 %v144, 2147483648
    %v184 = vor.u32 1.1754944e-38, %v183
    %v185 = vsel %vm182, %v184, %v180
    %v186 = vmul.f32 1.0, %v185
    %v187 = vrcp.pop %v156
    %v188 = vmul.f32 %v156, %v187
    %v189 = vsub.f32 1.0, %v188
    %v190 = vmul.f32 %v187, %v189
    %v191 = vadd.f32 %v187, %v190
    %vm192 = vweird.f32 %v156
    %vm193 = vweird.f32 %v187
    %vm194 = vmor %vm192, %vm193
    %v195 = vsel %vm194, %v187, %v191
    %v196 = vand.u32 2147483647, %v156
    %vm197 = vcmp.eq.f32.partialorder %v196, 8.507059e+37
    %v198 = vand.u32 %v156, 2147483648
    %v199 = vor.u32 1.1754944e-38, %v198
    %v200 = vsel %vm197, %v199, %v195
    %v201 = vmul.f32 1.0, %v200
    %v202 = vmul.f32 %v65, %v171
    %v203 = vmul.f32 %v66, %v186
    %v204 = vmul.f32 %v67, %v201
    %v206 = vsel %vm72, %v202, 0
    %v209 = vsel %vm72, %v203, 0
    %v212 = vsel %vm72, %v204, 0
    %214 = vmatpush.xpose.msra.mxu0 0.0
    %215 = vmatpush.xpose.msra.mxu0 0.0
    %216 = vmatpush.xpose.msra.mxu0 0.0
    %217 = vmatpush.xpose.msra.mxu0 0.0
    %218 = vmatpush.xpose.msra.mxu0 0.0
    %219 = vmatpush.xpose.msra.mxu0 0.0
    %220 = vmatpush.xpose.msra.mxu0 0.0
    %221 = vmatpush.xpose.msra.mxu0 0.0
    %222 = vmatpush.xpose.msra.mxu0 0.0
    %223 = vmatpush.xpose.msra.mxu0 0.0
    %224 = vmatpush.xpose.msra.mxu0 0.0
    %225 = vmatpush.xpose.msra.mxu0 0.0
    %226 = vmatpush.xpose.msra.mxu0 0.0
    %227 = vmatpush.xpose.msra.mxu0 %v212
    %228 = vmatpush.xpose.msra.mxu0 %v209
    %229 = vmatpush.xpose.msra.mxu0 %v206
    %230 = vmatmul.f32.gmra.mxu0 %v206
    %v231 = vpop.f32.mrf.mxu0
    %v232 = vadd.f32 0.0, %v231
    %233 = vmatmul.f32.gmra.mxu0 %v209
    %v234 = vpop.f32.mrf.mxu0
    %v235 = vadd.f32 0.0, %v234
    %236 = vmatmul.f32.gmra.mxu0 %v212
    %v237 = vpop.f32.mrf.mxu0
    %v238 = vadd.f32 0.0, %v237
    %239 = vdwg.mxu0
    %v240 = vld [vmem:[#allocation7] sm:$0xff]
    %v241 = vld [vmem:[#allocation7 + $0x8] sm:$0xff]
    %v242 = vld [vmem:[#allocation7 + $0x10] sm:$0xf]
    %v243 = vmul.f32 %v240, %v232
    %v244 = vmul.f32 %v241, %v235
    %v245 = vmul.f32 %v242, %v238
    %v246 = vld [vmem:[%s3] sm:$0x1]
    %v248 = vperm.slane %v246, 0
    %vm250 = vcmask 162816
    %v252 = vsel %vm250, %v243, 0
    %v255 = vsel %vm250, %v244, 0
    %v258 = vsel %vm250, %v245, 0
    %vm260 = vcmask 1043456
    %v262 = vsel %vm260, %v106, 0
    %264 = vmatpush.msra.mxu0 0.0
    %265 = vmatpush.msra.mxu0 0.0
    %266 = vmatpush.msra.mxu0 0.0
    %267 = vmatpush.msra.mxu0 0.0
    %268 = vmatpush.msra.mxu0 0.0
    %269 = vmatpush.msra.mxu0 0.0
    %270 = vmatpush.msra.mxu0 0.0
    %271 = vmatpush.msra.mxu0 0.0
    %272 = vmatpush.msra.mxu0 0.0
    %273 = vmatpush.msra.mxu0 0.0
    %274 = vmatpush.msra.mxu0 0.0
    %275 = vmatpush.msra.mxu0 0.0
    %276 = vmatpush.msra.mxu0 0.0
    %277 = vmatpush.msra.mxu0 %v262
    %278 = vmatpush.msra.mxu0 %v103
    %279 = vmatpush.msra.mxu0 %v100
    %280 = vmatmul.f32.gmra.mxu0 %v252
    %v281 = vpop.f32.mrf.mxu0
    %v282 = vadd.f32 %v248, %v281
    %283 = vmatmul.f32.gmra.mxu0 %v255
    %v284 = vpop.f32.mrf.mxu0
    %v285 = vadd.f32 %v248, %v284
    %286 = vmatmul.f32.gmra.mxu0 %v258
    %v287 = vpop.f32.mrf.mxu0
    %v288 = vadd.f32 %v248, %v287
    %289 = vdwg.mxu0
    %290 = vst [vmem:[#allocation8] sm:$0xff] %v282
    %291 = vst [vmem:[#allocation8 + $0x8] sm:$0xff] %v285
    %292 = vst [vmem:[#allocation8 + $0x10] sm:$0xf] %v288
    // Predicated region
    $region30: #{tpu_custom_call.1} parent=1 // pred_check
      _
    $region31: #{tpu_custom_call.1} parent=1 // pred_check_branch
      %294 = sbr.rel (0) target = $region33
    $region32: #{tpu_custom_call.1} parent=1 // pred_region
      %296 = vsyncadd [#allocation4], 0
      %s297 = sshll.u32 [#allocation8], 4
      %s298 = int_to_ptr.vmem [resolvable:$true] %s297
      %s299 = sshll.u32 %s4, 4
      %s300 = int_to_ptr.hbm [resolvable:$true] %s299
      %305 = dma.vmem_to_hbm [thread:$0]  %s298, 384, %s300, [#allocation4], 128, 128, 8
    $region33: #{tpu_custom_call.1} parent=1 // pred_fallthru
      _
    // Predicated region
    $region34: #{tpu_custom_call.1} parent=1 // pred_check
      _
    $region35: #{tpu_custom_call.1} parent=1 // pred_check_branch
      %307 = sbr.rel (0) target = $region37
    $region36: #{tpu_custom_call.1} parent=1 // pred_region
      %309 = dma.done [#allocation4], 384
    $region37: #{tpu_custom_call.1} parent=1 // pred_fallthru
      _
    %310 = vsyncpa [#allocation3], 1
    %311 = vsyncpa [#allocation6], 1
    %312 = vsyncpa [#allocation4], 1

</llo_original>
